<compile_context>
chip_gen: v5e
topology: v5e:2x2
jax: 0.10.0
libtpu: 0.0.40
codegen_flags: <defaults>
</compile_context>

<pallas_src>
import functools

import jax
import jax.numpy as jnp
from jax.experimental import pallas as pl
from jax.experimental.pallas import tpu as pltpu

BN_EPS = 1e-5
_FULL_K_MAX = 2048                 # single full-K block at/below this inp_dim
_MAX_TILE_K = 1024                 # K tile cap when K-tiling
_DEFAULT_VMEM = 64 * 1024 * 1024   # conservative fallback = v7x per-TC VMEM


def _round_up(v, m):
    return (v + m - 1) // m * m


def _vmem_capacity_bytes():
    try:
        cap = getattr(pltpu.get_tpu_info(), "vmem_capacity_bytes", None)
        if cap:
            return int(cap)
    except Exception:
        pass
    return _DEFAULT_VMEM


def _k_plan(inp_dim):
    """Return (k_pad, tile_k): reduce K in k_pad // tile_k grid steps."""
    if inp_dim <= _FULL_K_MAX:
        return inp_dim, inp_dim                      # one full-K step, no pad
    k_pad = _round_up(inp_dim, 128)
    nk = k_pad // 128
    cands = [d * 128 for d in range(1, nk + 1)
             if nk % d == 0 and d * 128 <= _MAX_TILE_K]
    return k_pad, max(cands)                         # d=1 always present


def _pick_tile_n(n, tile_k, out128, out_bytes, budget):
    """Feature tile: a multiple of 128 that divides out128 (zero pad waste)."""
    def fits(tn):
        x_b = 2 * n * tile_k * 2          # x bf16, double-buffered
        w_b = 2 * tile_k * tn * 2         # W^T bf16, double-buffered
        p_b = 2 * 2 * tn * 4              # gamma/beta f32, double-buffered
        o_b = 2 * n * tn * out_bytes      # output, double-buffered
        acc = n * tn * 4                  # f32 accumulator scratch
        tmp = 3 * n * tn * 4              # epilogue temporaries
        return x_b + w_b + p_b + o_b + acc + tmp <= budget

    nf = out128 // 128
    cands = sorted((d * 128 for d in range(1, nf + 1) if nf % d == 0),
                   reverse=True)
    fitting = [tn for tn in cands if fits(tn)] or [128]
    # v7x megacore: prefer an even number of equal feature steps so both
    # TensorCores get work -- but never drop weight DMAs below 512 wide.
    even = [tn for tn in fitting if (out128 // tn) % 2 == 0 and tn >= 512]
    return max(even) if even else max(fitting)


def _fc_bn_relu_kernel(x_ref, w_ref, p_ref, o_ref, acc_ref):
    kk = pl.program_id(1)

    @pl.when(kk == 0)
    def _():
        acc_ref[...] = jnp.zeros_like(acc_ref)

    # bf16 operands on the MXU, f32 accumulation.
    acc_ref[...] += jnp.dot(x_ref[...], w_ref[...],
                            preferred_element_type=jnp.float32)

    @pl.when(kk == pl.num_programs(1) - 1)
    def _():
        # BatchNorm1d training-mode forward (biased variance), f32 math.
        y = acc_ref[...]
        mean = jnp.mean(y, axis=0, keepdims=True)                 # (1, tn)
        centered = y - mean                                       # (N, tn)
        var = jnp.mean(centered * centered, axis=0, keepdims=True)
        scale = p_ref[0:1, :] * jax.lax.rsqrt(var + BN_EPS)       # gamma / std
        shift = p_ref[1:2, :]                                     # beta
        o_ref[...] = jnp.maximum(centered * scale + shift, 0.0).astype(o_ref.dtype)


def prepare_fc_params(w_t, gamma, beta):
    """One-time, off-hot-path prep: bf16 cast + 128-aligned padding of W^T and
    packing of the BN affine params into a single (2, out128) stream."""
    inp_dim, out_dim = w_t.shape
    k_pad, _ = _k_plan(inp_dim)
    out128 = _round_up(out_dim, 128)

    w_prep = w_t.astype(jnp.bfloat16)
    if (k_pad, out128) != (inp_dim, out_dim):
        w_prep = jnp.pad(w_prep, ((0, k_pad - inp_dim), (0, out128 - out_dim)))

    params = jnp.stack([gamma.reshape(-1), beta.reshape(-1)], axis=0)
    params = params.astype(jnp.float32)
    if out128 != out_dim:
        # Zero gamma/beta keeps padded columns finite (output exactly 0).
        params = jnp.pad(params, ((0, 0), (0, out128 - out_dim)))
    return w_prep, params


@functools.partial(jax.jit, static_argnames=("out_dim", "out_dtype"))
def fully_connected_forward(x, w_prep, params, *, out_dim,
                            out_dtype=jnp.float32):
    """x: (N, inp_dim).  w_prep/params from prepare_fc_params(w_t, gamma, beta).

    Implements Linear -> BatchNorm1d (batch stats) -> ReLU.  The nn.Linear bias
    is intentionally omitted: BN's batch-mean subtraction cancels it exactly.
    """
    n, inp_dim = x.shape
    k_pad, out128 = w_prep.shape
    _, tile_k = _k_plan(inp_dim)
    k_steps = k_pad // tile_k

    out_bytes = jnp.dtype(out_dtype).itemsize
    cap = _vmem_capacity_bytes()
    budget = int(cap * 0.7)
    tile_n = _pick_tile_n(n, tile_k, out128, out_bytes, budget)
    feat_steps = out128 // tile_n

    # Only the small per-call activation tensor is cast/padded per call.
    x_bf = x.astype(jnp.bfloat16)
    if k_pad != inp_dim:
        x_bf = jnp.pad(x_bf, ((0, 0), (0, k_pad - inp_dim)))

    # Pipeline knobs -- only engaged when the buffers are big enough to matter
    # (small shapes stay on the default, well-tested double-buffered path).
    x_bytes = n * tile_k * 2
    w_bytes = tile_k * tile_n * 2
    x_kwargs = {}
    if k_steps == 1 and x_bytes >= (2 << 20):
        # Grid-invariant x block: one buffer is enough; reclaims VMEM
        # (mostly matters on v7x's 64 MiB/TC).
        x_kwargs = dict(pipeline_mode=pl.Buffered(1))
    w_kwargs = {}
    vmem_used = (2 * x_bytes + 2 * w_bytes + 2 * 2 * tile_n * 4
                 + 2 * n * tile_n * out_bytes + 4 * n * tile_n * 4)
    if w_bytes >= (1 << 20) and vmem_used + w_bytes <= budget:
        # Memory-bound weight stream: a third buffer hides DMA issue latency.
        w_kwargs = dict(pipeline_mode=pl.Buffered(3))

    out = pl.pallas_call(
        _fc_bn_relu_kernel,
        out_shape=jax.ShapeDtypeStruct((n, out128), out_dtype),
        grid_spec=pltpu.PrefetchScalarGridSpec(
            num_scalar_prefetch=0,
            grid=(feat_steps, k_steps),                      # K reduction last
            in_specs=[
                pl.BlockSpec((n, tile_k), lambda j, kk: (0, kk), **x_kwargs),
                pl.BlockSpec((tile_k, tile_n), lambda j, kk: (kk, j), **w_kwargs),
                pl.BlockSpec((2, tile_n), lambda j, kk: (0, j)),
            ],
            out_specs=pl.BlockSpec((n, tile_n), lambda j, kk: (0, j)),
            scratch_shapes=[pltpu.VMEM((n, tile_n), jnp.float32)],
        ),
        compiler_params=pltpu.CompilerParams(
            dimension_semantics=("parallel", "arbitrary"),
            vmem_limit_bytes=int(cap * 0.9),
        ),
    )(x_bf, w_prep, params)

    # Slice only when out_dim itself is not 128-aligned (128-only padding).
    return out[:, :out_dim] if out128 != out_dim else out


def _reference(x, w_t, b, gamma, beta, *, matmul_dtype):
    """PyTorch-semantics reference: Linear (with bias) -> BN (batch stats) -> ReLU."""
    y = jnp.dot(
        x.astype(matmul_dtype), w_t.astype(matmul_dtype),
        preferred_element_type=jnp.float32,
    ) + b
    mean = jnp.mean(y, axis=0, keepdims=True)
    var = jnp.mean((y - mean) ** 2, axis=0, keepdims=True)
    y_hat = (y - mean) / jnp.sqrt(var + BN_EPS)
    return jnp.maximum(gamma[None, :] * y_hat + beta[None, :], 0.0)


if __name__ == "__main__":
    key = jax.random.PRNGKey(0)
    k_x, k_w, k_b = jax.random.split(key, 3)

    # Small shapes consistent with the module: batch=8, inp_dim=32, out_dim=256.
    N, INP_DIM, OUT_DIM = 8, 32, 256

    x = jax.random.normal(k_x, (N, INP_DIM), dtype=jnp.float32)

    # Deterministic parameter init mimicking PyTorch's Linear uniform bounds.
    bound = 1.0 / jnp.sqrt(jnp.float32(INP_DIM))
    w = jax.random.uniform(k_w, (OUT_DIM, INP_DIM), jnp.float32, -bound, bound)
    b = jax.random.uniform(k_b, (1, OUT_DIM), jnp.float32, -bound, bound)
    w_t = jnp.transpose(w)                         # (inp_dim, out_dim)
    gamma = jnp.ones((OUT_DIM,), jnp.float32)      # BatchNorm1d weight init
    beta = jnp.zeros((OUT_DIM,), jnp.float32)      # BatchNorm1d bias init

    # One-time weight prep (outside the hot path).
    w_prep, bn_params = prepare_fc_params(w_t, gamma, beta)
    w_prep, bn_params = jax.block_until_ready((w_prep, bn_params))

    out = fully_connected_forward(x, w_prep, bn_params, out_dim=OUT_DIM)
    out = jax.block_until_ready(out)

    # Tight check vs. a reference that matches the kernel's bf16 matmul
    # (and keeps the Linear bias -- BN cancels it, so results must agree).
    ref_bf16 = _reference(x, w_t, b, gamma, beta, matmul_dtype=jnp.bfloat16)
    # Loose check vs. the full-f32 PyTorch-equivalent forward.
    ref_f32 = _reference(x, w_t, b, gamma, beta, matmul_dtype=jnp.float32)

    assert out.shape == (N, OUT_DIM)
    assert jnp.allclose(out, ref_bf16, atol=1e-4, rtol=1e-4), "mismatch vs bf16 reference"
    assert jnp.allclose(out, ref_f32, atol=5e-2, rtol=5e-2), "mismatch vs f32 reference"

    print("KERNEL_OK")
</pallas_src>

<mosaic_0001>
module attributes {stable_mosaic.version = 11 : i64} {
  func.func @_fc_bn_relu_kernel(%arg0: i32, %arg1: i32, %arg2: memref<8x32xbf16, #tpu.memory_space<vmem>>, %arg3: memref<32x256xbf16, #tpu.memory_space<vmem>>, %arg4: memref<2x256xf32, #tpu.memory_space<vmem>>, %arg5: memref<8x256xf32, #tpu.memory_space<vmem>>, %arg6: memref<8x256xf32, #tpu.memory_space<vmem>>) attributes {dimension_semantics = [#tpu.dimension_semantics<parallel>, #tpu.dimension_semantics<arbitrary>], iteration_bounds = array<i64: 1, 1>, scalar_prefetch = 0 : i64, scratch_operands = 1 : i64, tpu.core_type = #tpu.core_type<tc>, window_params = [{transform_indices = @transform_0, window_bounds = array<i64: 8, 32>}, {transform_indices = @transform_1, window_bounds = array<i64: 32, 256>}, {transform_indices = @transform_2, window_bounds = array<i64: 2, 256>}, {transform_indices = @transform_3, window_bounds = array<i64: 8, 256>}]} {
    %c0_i32 = arith.constant 0 : i32
    %0 = arith.cmpi eq, %arg1, %c0_i32 : i32
    %1 = arith.extui %0 : i1 to i32
    %c0_i32_0 = arith.constant 0 : i32
    %2 = arith.cmpi ne, %1, %c0_i32_0 : i32
    scf.if %2 {
      %cst_10 = arith.constant 0.000000e+00 : f32
      %12 = vector.broadcast %cst_10 : f32 to vector<8x256xf32>
      %c0_11 = arith.constant 0 : index
      %c0_12 = arith.constant 0 : index
      %13 = vector.load %arg6[%c0_11, %c0_12] : memref<8x256xf32, #tpu.memory_space<vmem>>, vector<8x256xf32>
      tpu.vector_store %arg6[%c0_11, %c0_12], %12 {strides = array<i32>} : memref<8x256xf32, #tpu.memory_space<vmem>>, vector<8x256xf32>,
    } else {
    }
    %c0 = arith.constant 0 : index
    %c0_1 = arith.constant 0 : index
    %3 = vector.load %arg6[%c0, %c0_1] : memref<8x256xf32, #tpu.memory_space<vmem>>, vector<8x256xf32>
    %c0_2 = arith.constant 0 : index
    %c0_3 = arith.constant 0 : index
    %4 = vector.load %arg2[%c0_2, %c0_3] : memref<8x32xbf16, #tpu.memory_space<vmem>>, vector<8x32xbf16>
    %c0_4 = arith.constant 0 : index
    %c0_5 = arith.constant 0 : index
    %5 = vector.load %arg3[%c0_4, %c0_5] : memref<32x256xbf16, #tpu.memory_space<vmem>>, vector<32x256xbf16>
    %cst = arith.constant dense<0.000000e+00> : vector<8x256xf32>
    %6 = tpu.matmul %4, %5, %cst {dimension_numbers = #tpu.dot_dimension_numbers<[1], [0], [0], [1], [0, 0, 1, 1], [], []>} : vector<8x32xbf16>, vector<32x256xbf16>, vector<8x256xf32> -> vector<8x256xf32>
    %7 = arith.addf %3, %6 : vector<8x256xf32>
    %c0_6 = arith.constant 0 : index
    %c0_7 = arith.constant 0 : index
    %8 = vector.load %arg6[%c0_6, %c0_7] : memref<8x256xf32, #tpu.memory_space<vmem>>, vector<8x256xf32>
    tpu.vector_store %arg6[%c0_6, %c0_7], %7 {strides = array<i32>} : memref<8x256xf32, #tpu.memory_space<vmem>>, vector<8x256xf32>,
    %c0_i32_8 = arith.constant 0 : i32
    %9 = arith.cmpi eq, %arg1, %c0_i32_8 : i32
    %10 = arith.extui %9 : i1 to i32
    %c0_i32_9 = arith.constant 0 : i32
    %11 = arith.cmpi ne, %10, %c0_i32_9 : i32
    scf.if %11 {
      %c0_10 = arith.constant 0 : index
      %c0_11 = arith.constant 0 : index
      %12 = vector.load %arg6[%c0_10, %c0_11] : memref<8x256xf32, #tpu.memory_space<vmem>>, vector<8x256xf32>
      %cst_12 = arith.constant dense<0.000000e+00> : vector<256xf32>
      %13 = vector.multi_reduction <add>, %12, %cst_12 [0] : vector<8x256xf32> to vector<256xf32>
      %14 = vector.shape_cast %13 : vector<256xf32> to vector<1x256xf32>
      %cst_13 = arith.constant 8.000000e+00 : f32
      %15 = vector.broadcast %cst_13 : f32 to vector<1x256xf32>
      %16 = arith.divf %14, %15 : vector<1x256xf32>
      %17 = vector.broadcast %16 : vector<1x256xf32> to vector<8x256xf32>
      %18 = arith.subf %12, %17 : vector<8x256xf32>
      %19 = arith.mulf %18, %18 : vector<8x256xf32>
      %cst_14 = arith.constant dense<0.000000e+00> : vector<256xf32>
      %20 = vector.multi_reduction <add>, %19, %cst_14 [0] : vector<8x256xf32> to vector<256xf32>
      %21 = vector.shape_cast %20 : vector<256xf32> to vector<1x256xf32>
      %cst_15 = arith.constant 8.000000e+00 : f32
      %22 = vector.broadcast %cst_15 : f32 to vector<1x256xf32>
      %23 = arith.divf %21, %22 : vector<1x256xf32>
      %c0_16 = arith.constant 0 : index
      %c0_17 = arith.constant 0 : index
      %24 = vector.load %arg4[%c0_16, %c0_17] : memref<2x256xf32, #tpu.memory_space<vmem>>, vector<1x256xf32>
      %cst_18 = arith.constant 9.99999974E-6 : f32
      %25 = vector.broadcast %cst_18 : f32 to vector<1x256xf32>
      %26 = arith.addf %23, %25 : vector<1x256xf32>
      %27 = math.rsqrt %26 : vector<1x256xf32>
      %28 = arith.mulf %24, %27 : vector<1x256xf32>
      %c1 = arith.constant 1 : index
      %c0_19 = arith.constant 0 : index
      %29 = vector.load %arg4[%c1, %c0_19] : memref<2x256xf32, #tpu.memory_space<vmem>>, vector<1x256xf32>
      %30 = vector.broadcast %28 : vector<1x256xf32> to vector<8x256xf32>
      %31 = arith.mulf %18, %30 : vector<8x256xf32>
      %32 = vector.broadcast %29 : vector<1x256xf32> to vector<8x256xf32>
      %33 = arith.addf %31, %32 : vector<8x256xf32>
      %cst_20 = arith.constant 0.000000e+00 : f32
      %34 = vector.broadcast %cst_20 : f32 to vector<8x256xf32>
      %35 = arith.maximumf %33, %34 : vector<8x256xf32>
      %c0_21 = arith.constant 0 : index
      %c0_22 = arith.constant 0 : index
      %36 = vector.load %arg5[%c0_21, %c0_22] : memref<8x256xf32, #tpu.memory_space<vmem>>, vector<8x256xf32>
      tpu.vector_store %arg5[%c0_21, %c0_22], %35 {strides = array<i32>} : memref<8x256xf32, #tpu.memory_space<vmem>>, vector<8x256xf32>,
    } else {
    }
    return
  }
  func.func @transform_0(%arg0: i32, %arg1: i32) -> (i32, i32) {
    %c0_i32 = arith.constant 0 : i32
    %c0_i32_0 = arith.constant 0 : i32
    return %c0_i32, %arg1 : i32, i32
  }
  func.func @transform_1(%arg0: i32, %arg1: i32) -> (i32, i32) {
    %c0_i32 = arith.constant 0 : i32
    return %arg1, %arg0 : i32, i32
  }
  func.func @transform_2(%arg0: i32, %arg1: i32) -> (i32, i32) {
    %c0_i32 = arith.constant 0 : i32
    %c0_i32_0 = arith.constant 0 : i32
    return %c0_i32, %arg0 : i32, i32
  }
  func.func @transform_3(%arg0: i32, %arg1: i32) -> (i32, i32) {
    %c0_i32 = arith.constant 0 : i32
    %c0_i32_0 = arith.constant 0 : i32
    return %c0_i32, %arg0 : i32, i32
  }
}

</mosaic_0001>

<llo_original>
// kernel: fully_connected_forward.1
$region0: #{fully_connected_forward.1}
  #allocation0 [shape = 'u32[]', space=smem, size = 0x4, offset = 0x4, fixed_abs, tag = 'smem constant byte address 0x4 - core index']
  #allocation1 [shape = 'u32[72,128]{1,0:T(1,128)}', space=vmem, size = 0x9000, scoped, tag = 'internal scratch']
  #allocation2 [shape = 'f32[8,256]{1,0:T(8,128)}', space=vmem, size = 0x2000, scoped, tag = 'scratch operand']
  %s0 = inlined_call_operand.vmem [shape: bf16[8,32], index: 0, kind: input, shape index: {}]
  %s1 = inlined_call_operand.hbm [shape: bf16[32,256], index: 1, kind: input, shape index: {}]
  %s2 = inlined_call_operand.vmem [shape: f32[2,256], index: 2, kind: input, shape index: {}]
  %s3 = inlined_call_operand.hbm [shape: f32[8,256], index: 3, kind: output, shape index: {}]
  %s4 = sld [smem:[#allocation0]]
  $region34: #{fully_connected_forward.1} parent=0
    _
  %s6 = ssub.s32 1, %s4
  %s7 = scalar_select 0, %s6, %s4
  $region1: #{fully_connected_forward.1} parent=0
    #allocation3 [shape = 'u8[16384]{0}', space=vmem, size = 0x4000, scoped, tag = 'input window, operand 1, single buffered']
    #allocation4 [shape = 's32[1]{0}', space=sflag, size = 0x4, scoped, tag = 'scoped memory for fully_connected_forward.1']
    #allocation5 [shape = 's32[1]{0}', space=sflag, size = 0x4, scoped, tag = 'scoped memory for fully_connected_forward.1']
    #allocation6 [shape = 'u8[8192]{0}', space=vmem, size = 0x2000, scoped, tag = 'output window, operand 0, single buffered']
    %8 = vsyncpa [#allocation4], 0
    %9 = vsyncpa [#allocation5], 0
    // Predicated region
    $region2: #{fully_connected_forward.1} parent=1 // pred_check
      _
    $region3: #{fully_connected_forward.1} parent=1 // pred_check_branch
      %11 = sbr.rel (0) target = $region5
    $region4: #{fully_connected_forward.1} parent=1 // pred_region
      _
    $region5: #{fully_connected_forward.1} parent=1 // pred_fallthru
      _
    // Predicated region
    $region6: #{fully_connected_forward.1} parent=1 // pred_check
      _
    $region7: #{fully_connected_forward.1} parent=1 // pred_check_branch
      %13 = sbr.rel (0) target = $region9
    $region8: #{fully_connected_forward.1} parent=1 // pred_region
      %15 = vsyncadd [#allocation4], 0
      %s16 = sshll.u32 %s1, 4
      %s17 = int_to_ptr.hbm [resolvable:$true] %s16
      %s18 = sshll.u32 [#allocation3], 4
      %s19 = int_to_ptr.vmem [resolvable:$true] %s18
      %24 = dma.hbm_to_vmem [thread:$0]  %s17, 512, %s19, [#allocation4], 128, 128, 8
    $region9: #{fully_connected_forward.1} parent=1 // pred_fallthru
      _
    // Predicated region
    $region10: #{fully_connected_forward.1} parent=1 // pred_check
      _
    $region11: #{fully_connected_forward.1} parent=1 // pred_check_branch
      %26 = sbr.rel (0) target = $region13
    $region12: #{fully_connected_forward.1} parent=1 // pred_region
      _
    $region13: #{fully_connected_forward.1} parent=1 // pred_fallthru
      _
    // Predicated region
    $region14: #{fully_connected_forward.1} parent=1 // pred_check
      _
    $region15: #{fully_connected_forward.1} parent=1 // pred_check_branch
      %28 = sbr.rel (0) target = $region17
    $region16: #{fully_connected_forward.1} parent=1 // pred_region
      %30 = dma.done [#allocation4], 512
    $region17: #{fully_connected_forward.1} parent=1 // pred_fallthru
      _
    %p32 = scmp.eq.s32.totalorder 0, 0
    // Predicated region
    $region18: #{fully_connected_forward.1} parent=1 // pred_check
      %p33 = pneg %p32
    $region19: #{fully_connected_forward.1} parent=1 // pred_check_branch
      %35 = sbr.rel (%p33) target = $region21
    $region20: #{fully_connected_forward.1} parent=1 // pred_region
      %36 = vst [vmem:[#allocation2] sm:$0xff] 0.0
      %37 = vst [vmem:[#allocation2 + $0x8] sm:$0xff] 0.0
    $region21: #{fully_connected_forward.1} parent=1 // pred_fallthru
      _
    %v38 = vld [vmem:[#allocation2] sm:$0xff]
    %v39 = vld [vmem:[#allocation2 + $0x8] sm:$0xff]
    %v40 = vld [vmem:[%s0] sm:$0xf]
    %v41 = vld [vmem:[#allocation3] sm:$0xff]
    %v42 = vld [vmem:[#allocation3 + $0x8] sm:$0xff]
    %v43 = vld [vmem:[#allocation3 + $0x10] sm:$0xff]
    %v44 = vld [vmem:[#allocation3 + $0x18] sm:$0xff]
    %v49 = vunpack.c.l.b16 %v41
    %v50 = vunpack.c.h.b16 %v41
    %v51 = vunpack.c.l.b16 %v42
    %v52 = vunpack.c.h.b16 %v42
    %v53 = vunpack.c.l.b16 %v43
    %v54 = vunpack.c.h.b16 %v43
    %v55 = vunpack.c.l.b16 %v44
    %v56 = vunpack.c.h.b16 %v44
    %v57 = vpack.c.b16 %v51, %v49
    %v58 = vpack.c.b16 %v52, %v50
    %v59 = vpack.c.b16 %v55, %v53
    %v60 = vpack.c.b16 %v56, %v54
    %vm65 = vcmask 261120
    %v67 = vsel %vm65, %v40, 0
    %69 = vmatpush.bf16.msra.mxu0 0
    %70 = vmatpush.bf16.msra.mxu0 0
    %71 = vmatpush.bf16.msra.mxu0 0
    %72 = vmatpush.bf16.msra.mxu0 0
    %73 = vmatpush.bf16.msra.mxu0 0
    %74 = vmatpush.bf16.msra.mxu0 0
    %75 = vmatpush.bf16.msra.mxu0 %v59
    %76 = vmatpush.bf16.msra.mxu0 %v57
    %77 = vmatmul.bf16.gmra.mxu0 %v67
    %v78 = vpop.f32.mrf.mxu0
    %v79 = vadd.f32 0.0, %v78
    %v80 = vpop.f32.mrf.mxu0
    %81 = vdwg.mxu0
    %82 = vmatpush.bf16.msra.mxu0 0
    %83 = vmatpush.bf16.msra.mxu0 0
    %84 = vmatpush.bf16.msra.mxu0 0
    %85 = vmatpush.bf16.msra.mxu0 0
    %86 = vmatpush.bf16.msra.mxu0 0
    %87 = vmatpush.bf16.msra.mxu0 0
    %88 = vmatpush.bf16.msra.mxu0 %v60
    %89 = vmatpush.bf16.msra.mxu0 %v58
    %90 = vmatmul.bf16.gmra.mxu0 %v67
    %v91 = vpop.f32.mrf.mxu0
    %v92 = vadd.f32 0.0, %v91
    %v93 = vpop.f32.mrf.mxu0
    %94 = vdwg.mxu0
    %v95 = vadd.f32 %v38, %v79
    %v96 = vadd.f32 %v39, %v92
    %97 = vst [vmem:[#allocation2] sm:$0xff] %v95
    %98 = vst [vmem:[#allocation2 + $0x8] sm:$0xff] %v96
    // Predicated region
    $region22: #{fully_connected_forward.1} parent=1 // pred_check
      %p99 = pneg %p32
    $region23: #{fully_connected_forward.1} parent=1 // pred_check_branch
      %101 = sbr.rel (%p99) target = $region25
    $region24: #{fully_connected_forward.1} parent=1 // pred_region
      %v102 = vld [vmem:[#allocation2] sm:$0xff]
      %v103 = vld [vmem:[#allocation2 + $0x8] sm:$0xff]
      %v104 = vrot.slane %v102, 4
      %v105 = vadd.f32 %v102, %v104
      %v106 = vrot.slane %v105, 2
      %v107 = vadd.f32 %v105, %v106
      %v108 = vrot.slane %v107, 1
      %v109 = vadd.f32 %v107, %v108
      %v110 = vrot.slane %v103, 4
      %v111 = vadd.f32 %v103, %v110
      %v112 = vrot.slane %v111, 2
      %v113 = vadd.f32 %v111, %v112
      %v114 = vrot.slane %v113, 1
      %v115 = vadd.f32 %v113, %v114
      %v116 = vrcp.pop 8.0
      %v117 = vmul.f32 8.0, %v116
      %v118 = vsub.f32 1.0, %v117
      %v119 = vmul.f32 %v116, %v118
      %v120 = vadd.f32 %v116, %v119
      %vm121 = vweird.f32 %v116
      %v122 = vsel %vm121, %v116, %v120
      %v123 = vmul.f32 %v109, %v122
      %v124 = vmul.f32 %v115, %v122
      %v125 = vsub.f32 %v102, %v123
      %v126 = vsub.f32 %v103, %v124
      %v127 = vmul.f32 %v125, %v125
      %v128 = vmul.f32 %v126, %v126
      %v129 = vrot.slane %v127, 4
      %v130 = vadd.f32 %v127, %v129
      %v131 = vrot.slane %v130, 2
      %v132 = vadd.f32 %v130, %v131
      %v133 = vrot.slane %v132, 1
      %v134 = vadd.f32 %v132, %v133
      %v135 = vrot.slane %v128, 4
      %v136 = vadd.f32 %v128, %v135
      %v137 = vrot.slane %v136, 2
      %v138 = vadd.f32 %v136, %v137
      %v139 = vrot.slane %v138, 1
      %v140 = vadd.f32 %v138, %v139
      %v141 = vmul.f32 %v134, %v122
      %v142 = vmul.f32 %v140, %v122
      %v143 = vld [vmem:[%s2] ss:$2 sm:$0x3]
      %v144 = vadd.f32 %v141, 1e-05
      %v145 = vadd.f32 %v142, 1e-05
      %v146 = vrsqrt.pop %v144
      %v147 = vmul.f32 %v146, %v144
      %v148 = vmul.f32 %v147, %v146
      %v149 = vmul.f32 0.5, %v148
      %v150 = vsub.f32 1.5, %v149
      %v151 = vmul.f32 %v146, %v150
      %vm152 = vweird.f32 %v144
      %vm153 = vweird.f32 %v146
      %vm154 = vmor %vm152, %vm153
      %v155 = vsel %vm154, %v146, %v151
      %v156 = vrsqrt.pop %v145
      %v157 = vmul.f32 %v156, %v145
      %v158 = vmul.f32 %v157, %v156
      %v159 = vmul.f32 0.5, %v158
      %v160 = vsub.f32 1.5, %v159
      %v161 = vmul.f32 %v156, %v160
      %vm162 = vweird.f32 %v145
      %vm163 = vweird.f32 %v156
      %vm164 = vmor %vm162, %vm163
      %v165 = vsel %vm164, %v156, %v161
      %v168 = vrot.slane %v165, 7
      %vm169 = vcmask 1040384
      %v170 = vsel %vm169, %v155, %v168
      %v172 = vmul.f32 %v143, %v170
      %s173 = scalar_lea.vmem %s2, 1
      %v174 = vld [vmem:[%s173] ss:$2 sm:$0x3]
      %v176 = vperm.slane %v172, 0
      %v177 = vperm.slane %v172, 1
      %v180 = vmul.f32 %v125, %v176
      %v181 = vmul.f32 %v126, %v177
      %v183 = vperm.slane %v174, 0
      %v184 = vperm.slane %v174, 1
      %v187 = vadd.f32 %v180, %v183
      %v188 = vadd.f32 %v181, %v184
      %v189 = vmax.f32 %v187, 0.0
      %v190 = vmax.f32 %v188, 0.0
      %191 = vst [vmem:[#allocation6] sm:$0xff] %v189
      %192 = vst [vmem:[#allocation6 + $0x8] sm:$0xff] %v190
    $region25: #{fully_connected_forward.1} parent=1 // pred_fallthru
      _
    // Predicated region
    $region26: #{fully_connected_forward.1} parent=1 // pred_check
      _
    $region27: #{fully_connected_forward.1} parent=1 // pred_check_branch
      %194 = sbr.rel (0) target = $region29
    $region28: #{fully_connected_forward.1} parent=1 // pred_region
      %196 = vsyncadd [#allocation5], 0
      %s198 = sshll.u32 [#allocation6], 4
      %s199 = int_to_ptr.vmem [resolvable:$true] %s198
      %s200 = sshll.u32 %s3, 4
      %s201 = int_to_ptr.hbm [resolvable:$true] %s200
      %203 = dma.vmem_to_hbm [thread:$0]  %s199, 256, %s201, [#allocation5]
    $region29: #{fully_connected_forward.1} parent=1 // pred_fallthru
      _
    // Predicated region
    $region30: #{fully_connected_forward.1} parent=1 // pred_check
      _
    $region31: #{fully_connected_forward.1} parent=1 // pred_check_branch
      %205 = sbr.rel (0) target = $region33
    $region32: #{fully_connected_forward.1} parent=1 // pred_region
      %207 = dma.done [#allocation5], 256
    $region33: #{fully_connected_forward.1} parent=1 // pred_fallthru
      _
    %208 = vsyncpa [#allocation4], 1
    %209 = vsyncpa [#allocation5], 1

</llo_original>
